<compile_context>
chip_gen: v7x
topology: tpu7x:2x2x1
jax: 0.10.0
libtpu: 0.0.40
codegen_flags: <defaults>
</compile_context>

<pallas_src>
import math
import jax
import jax.numpy as jnp
from jax.experimental import pallas as pl
from jax.experimental.pallas import tpu as pltpu


# Default cap on the batch (lane) tile.  8192 lanes keeps the double-buffered
# inputs + f32 intermediates around ~4 MiB, far below every generation's VMEM.
_MAX_TB = 8192


def _round_up(x, m):
    return ((x + m - 1) // m) * m


def critic_mlp_kernel(x_ref, w1_ref, b1_ref, w2_ref, b2_ref, w3_ref, b3_ref,
                      o_ref):
    """Fused 3-layer MLP; transposed layout: activations are (features, batch)."""
    # Layer 1: single packed K=8 MXU matmul (concat fused away), f32 accumulate.
    h1 = jnp.dot(w1_ref[...], x_ref[...],
                 preferred_element_type=jnp.float32) + b1_ref[...]   # (n_feat, tb)
    h1 = jnp.maximum(h1, 0.0)

    # Layer 2: MXU matmul with N = batch (lane-dense).  Cast the activation to
    # the weight dtype so bf16 weights get a native-rate bf16 MXU pass.
    h2 = jnp.dot(w2_ref[...], h1.astype(w2_ref.dtype),
                 preferred_element_type=jnp.float32) + b2_ref[...]   # (n_feat, tb)
    h2 = jnp.maximum(h2, 0.0)

    # Layer 3 (n_out == 1): VPU multiply + sublane (XLU) reduce instead of an
    # N=1 MXU pass.  b3 is a scalar read from SMEM.
    q = jnp.sum(h2 * w3_ref[...], axis=0, keepdims=True) + b3_ref[0, 0]  # (1, tb)
    o_ref[...] = q.astype(o_ref.dtype)


def critic_forward(state, action, params, *, batch_tile=None):
    """Run the fused Pallas critic.  `params = (w1, b1, w2, b2, w3, b3)`.

    w1: (n_feat, n_state+n_action)  [compute dtype, f32 or bf16]
    w2: (n_feat, n_feat)            [compute dtype]
    b1, b2: (n_feat, 1) f32;  w3: (n_feat, 1) f32;  b3: (1, 1) f32
    """
    w1, b1, w2, b2, w3, b3 = params
    compute_dtype = w1.dtype

    B = state.shape[0]
    n_state = state.shape[1]
    n_action = action.shape[1]
    n_in = n_state + n_action
    n_feat = w2.shape[0]
    assert w1.shape == (n_feat, n_in)
    assert w3.shape == (n_feat, 1), "SAC critic has a single Q output"

    # ---- batch (lane) tile selection -------------------------------------
    if batch_tile is not None:
        tb = int(batch_tile)
        if tb != B and tb % 128 != 0:
            raise ValueError(
                "batch_tile must equal the batch size or be a multiple of 128")
    elif B < 256:
        tb = B                                      # one tiny full-batch tile
    elif B <= 2 * _MAX_TB:
        tb = _round_up(pl.cdiv(B, 2), 128)          # exactly 2 balanced tiles (v7x 2-TC)
    else:
        tb = _MAX_TB                                # stream 8192-lane tiles

    b_pad = _round_up(B, tb)
    grid = (b_pad // tb,)

    # ---- single fused producer: cast + concat + pad + transpose ----------
    x = jnp.concatenate([state.astype(jnp.float32),
                         action.astype(jnp.float32)], axis=1)        # (B, n_in)
    if b_pad != B:
        x = jnp.pad(x, ((0, b_pad - B), (0, 0)))                     # (b_pad, n_in)
    x_t = x.T.astype(compute_dtype)                                  # (n_in, b_pad)

    q_pad = pl.pallas_call(
        critic_mlp_kernel,
        out_shape=jax.ShapeDtypeStruct((1, b_pad), jnp.float32),
        grid=grid,
        in_specs=[
            pl.BlockSpec((n_in, tb), lambda i: (0, i)),        # packed x^T (streams over batch)
            pl.BlockSpec((n_feat, n_in), lambda i: (0, 0)),    # W1 (resident)
            pl.BlockSpec((n_feat, 1), lambda i: (0, 0)),       # b1
            pl.BlockSpec((n_feat, n_feat), lambda i: (0, 0)),  # W2 (resident)
            pl.BlockSpec((n_feat, 1), lambda i: (0, 0)),       # b2
            pl.BlockSpec((n_feat, 1), lambda i: (0, 0)),       # w3 (column)
            pl.BlockSpec(memory_space=pltpu.MemorySpace.SMEM), # b3 scalar in SMEM
        ],
        out_specs=pl.BlockSpec((1, tb), lambda i: (0, i)),     # lane-dense output slab
        compiler_params=pltpu.CompilerParams(
            dimension_semantics=("parallel",),
            vmem_limit_bytes=32 * 1024 * 1024),
    )(x_t, w1, b1, w2, b2, w3, b3)

    # (1, b_pad) -> (B,): drop batch padding; matches torch.squeeze on (B, 1).
    return q_pad[0, :B]


# -------------------------- parameter handling ------------------------------

def xavier_uniform(key, shape, fan_in, fan_out, gain):
    """Matches nn.init.xavier_uniform_ (bound depends only on fan_in/fan_out)."""
    bound = gain * math.sqrt(6.0 / (fan_in + fan_out))
    return jax.random.uniform(key, shape, jnp.float32, -bound, bound)


def linear_bias(key, fan_in, shape):
    """Matches torch.nn.Linear default bias init: U(-1/sqrt(fan_in), 1/sqrt(fan_in))."""
    bound = 1.0 / math.sqrt(fan_in)
    return jax.random.uniform(key, shape, jnp.float32, -bound, bound)


def init_critic_params(key, n_state, n_action, n_features, n_output=1):
    """f32 master weights, stored in the transposed-kernel layout (features-major)."""
    assert n_output == 1
    n_input = n_state + n_action
    k = jax.random.split(key, 6)
    gain_relu = math.sqrt(2.0)   # calculate_gain('relu')
    gain_lin = 1.0               # calculate_gain('linear')

    w1 = xavier_uniform(k[0], (n_features, n_input), n_input, n_features, gain_relu)
    b1 = linear_bias(k[1], n_input, (n_features, 1))
    w2 = xavier_uniform(k[2], (n_features, n_features), n_features, n_features, gain_relu)
    b2 = linear_bias(k[3], n_features, (n_features, 1))
    # W3: PyTorch shape (1, n_features), stored as an (n_features, 1) column.
    w3 = xavier_uniform(k[4], (n_features, 1), n_features, n_output, gain_lin)
    b3 = linear_bias(k[5], n_features, (1, 1))
    return (w1, b1, w2, b2, w3, b3)


def prepare_params(params, compute_dtype=jnp.bfloat16):
    """Cast the MXU operands (W1, W2) to the compute dtype once, up front.

    Biases, the final w3 column and b3 stay f32 (applied on the f32 accumulator,
    so v5e's lack of bf16 VPU is irrelevant).
    """
    w1, b1, w2, b2, w3, b3 = params
    return (w1.astype(compute_dtype), b1, w2.astype(compute_dtype), b2, w3, b3)


# ------------------------------ reference -----------------------------------

def _reference(state, action, params_f32):
    """Pure-JAX reference in the original PyTorch orientation (f32 weights)."""
    w1, b1, w2, b2, w3, b3 = params_f32
    x = jnp.concatenate([state.astype(jnp.float32), action.astype(jnp.float32)], axis=1)
    h1 = jnp.maximum(x @ w1.T + b1[:, 0], 0.0)
    h2 = jnp.maximum(h1 @ w2.T + b2[:, 0], 0.0)
    q = h2 @ w3 + b3[0, 0]                                   # (B, 1)
    return jnp.squeeze(q)


if __name__ == "__main__":
    # Shapes consistent with the module: n_state + n_action = 6 + 2 = 8,
    # n_features = 32, n_output = 1.
    n_state, n_action = 6, 2
    n_features, n_output = 32, 1

    key = jax.random.PRNGKey(0)
    k_p, k_s1, k_a1, k_s2, k_a2, k_s3, k_a3 = jax.random.split(key, 7)
    params_f32 = init_critic_params(k_p, n_state, n_action, n_features, n_output)
    params_bf16 = prepare_params(params_f32, jnp.bfloat16)

    # Case 1: tiny batch, single full-batch tile, exact f32 path.
    batch = 8
    state = jax.random.normal(k_s1, (batch, n_state), jnp.float32)
    action = jax.random.normal(k_a1, (batch, n_action), jnp.float32)
    q = jax.block_until_ready(critic_forward(state, action, params_f32))
    q_ref = _reference(state, action, params_f32)
    assert q.shape == q_ref.shape == (batch,)
    assert jnp.allclose(q, q_ref, atol=1e-5, rtol=1e-5)

    # Case 2: ragged batch -> padded to 2 balanced 128-aligned tiles, f32 exact.
    batch2 = 300
    state2 = jax.random.normal(k_s2, (batch2, n_state), jnp.float32)
    action2 = jax.random.normal(k_a2, (batch2, n_action), jnp.float32)
    q2 = jax.block_until_ready(critic_forward(state2, action2, params_f32))
    q2_ref = _reference(state2, action2, params_f32)
    assert q2.shape == q2_ref.shape == (batch2,)
    assert jnp.allclose(q2, q2_ref, atol=1e-5, rtol=1e-5)

    # Case 3: larger batch with bf16 MXU operands (2 tiles of 256 lanes);
    # compared against the f32 reference with a loosened tolerance.
    batch3 = 512
    state3 = jax.random.normal(k_s3, (batch3, n_state), jnp.float32)
    action3 = jax.random.normal(k_a3, (batch3, n_action), jnp.float32)
    q3 = jax.block_until_ready(critic_forward(state3, action3, params_bf16))
    q3_ref = _reference(state3, action3, params_f32)
    assert q3.shape == q3_ref.shape == (batch3,)
    assert jnp.allclose(q3, q3_ref, atol=5e-2, rtol=5e-2)

    print("KERNEL_OK")
</pallas_src>

<mosaic_0001>
module attributes {stable_mosaic.version = 11 : i64} {
  func.func @critic_mlp_kernel(%arg0: i32, %arg1: memref<8x8xf32, #tpu.memory_space<vmem>>, %arg2: memref<32x8xf32, #tpu.memory_space<vmem>>, %arg3: memref<32x1xf32, #tpu.memory_space<vmem>>, %arg4: memref<32x32xf32, #tpu.memory_space<vmem>>, %arg5: memref<32x1xf32, #tpu.memory_space<vmem>>, %arg6: memref<32x1xf32, #tpu.memory_space<vmem>>, %arg7: memref<1x1xf32, #tpu.memory_space<smem>>, %arg8: memref<1x8xf32, #tpu.memory_space<vmem>>) attributes {dimension_semantics = [#tpu.dimension_semantics<parallel>], iteration_bounds = array<i64: 1>, scalar_prefetch = 0 : i64, scratch_operands = 0 : i64, tpu.core_type = #tpu.core_type<tc>, window_params = [{transform_indices = @transform_0, window_bounds = array<i64: 8, 8>}, {pipeline_mode = #tpu.pipeline_mode<synchronous>, transform_indices = @transform_1, window_bounds = array<i64: 32, 8>}, {pipeline_mode = #tpu.pipeline_mode<synchronous>, transform_indices = @transform_2, window_bounds = array<i64: 32, 1>}, {pipeline_mode = #tpu.pipeline_mode<synchronous>, transform_indices = @transform_3, window_bounds = array<i64: 32, 32>}, {pipeline_mode = #tpu.pipeline_mode<synchronous>, transform_indices = @transform_4, window_bounds = array<i64: 32, 1>}, {pipeline_mode = #tpu.pipeline_mode<synchronous>, transform_indices = @transform_5, window_bounds = array<i64: 32, 1>}, {transform_indices = @transform_6, window_bounds = array<i64: 1, 1>}, {transform_indices = @transform_7, window_bounds = array<i64: 1, 8>}]} {
    %c0 = arith.constant 0 : index
    %c0_0 = arith.constant 0 : index
    %0 = vector.load %arg2[%c0, %c0_0] : memref<32x8xf32, #tpu.memory_space<vmem>>, vector<32x8xf32>
    %c0_1 = arith.constant 0 : index
    %c0_2 = arith.constant 0 : index
    %1 = vector.load %arg1[%c0_1, %c0_2] : memref<8x8xf32, #tpu.memory_space<vmem>>, vector<8x8xf32>
    %cst = arith.constant dense<0.000000e+00> : vector<32x8xf32>
    %2 = tpu.matmul %0, %1, %cst {dimension_numbers = #tpu.dot_dimension_numbers<[1], [0], [0], [1], [0, 0, 1, 1], [], []>} : vector<32x8xf32>, vector<8x8xf32>, vector<32x8xf32> -> vector<32x8xf32>
    %c0_3 = arith.constant 0 : index
    %c0_4 = arith.constant 0 : index
    %3 = vector.load %arg3[%c0_3, %c0_4] : memref<32x1xf32, #tpu.memory_space<vmem>>, vector<32x1xf32>
    %4 = vector.broadcast %3 : vector<32x1xf32> to vector<32x8xf32>
    %5 = arith.addf %2, %4 : vector<32x8xf32>
    %cst_5 = arith.constant 0.000000e+00 : f32
    %6 = vector.broadcast %cst_5 : f32 to vector<32x8xf32>
    %7 = arith.maximumf %5, %6 : vector<32x8xf32>
    %c0_6 = arith.constant 0 : index
    %c0_7 = arith.constant 0 : index
    %8 = vector.load %arg4[%c0_6, %c0_7] : memref<32x32xf32, #tpu.memory_space<vmem>>, vector<32x32xf32>
    %cst_8 = arith.constant dense<0.000000e+00> : vector<32x8xf32>
    %9 = tpu.matmul %8, %7, %cst_8 {dimension_numbers = #tpu.dot_dimension_numbers<[1], [0], [0], [1], [0, 0, 1, 1], [], []>} : vector<32x32xf32>, vector<32x8xf32>, vector<32x8xf32> -> vector<32x8xf32>
    %c0_9 = arith.constant 0 : index
    %c0_10 = arith.constant 0 : index
    %10 = vector.load %arg5[%c0_9, %c0_10] : memref<32x1xf32, #tpu.memory_space<vmem>>, vector<32x1xf32>
    %11 = vector.broadcast %10 : vector<32x1xf32> to vector<32x8xf32>
    %12 = arith.addf %9, %11 : vector<32x8xf32>
    %cst_11 = arith.constant 0.000000e+00 : f32
    %13 = vector.broadcast %cst_11 : f32 to vector<32x8xf32>
    %14 = arith.maximumf %12, %13 : vector<32x8xf32>
    %c0_12 = arith.constant 0 : index
    %c0_13 = arith.constant 0 : index
    %15 = vector.load %arg6[%c0_12, %c0_13] : memref<32x1xf32, #tpu.memory_space<vmem>>, vector<32x1xf32>
    %16 = vector.broadcast %15 : vector<32x1xf32> to vector<32x8xf32>
    %17 = arith.mulf %14, %16 : vector<32x8xf32>
    %cst_14 = arith.constant dense<0.000000e+00> : vector<8xf32>
    %18 = vector.multi_reduction <add>, %17, %cst_14 [0] : vector<32x8xf32> to vector<8xf32>
    %19 = vector.shape_cast %18 : vector<8xf32> to vector<1x8xf32>
    %c0_15 = arith.constant 0 : index
    %c0_16 = arith.constant 0 : index
    %20 = memref.load %arg7[%c0_15, %c0_16] : memref<1x1xf32, #tpu.memory_space<smem>>
    %21 = vector.broadcast %20 : f32 to vector<1x8xf32>
    %22 = arith.addf %19, %21 : vector<1x8xf32>
    %c0_17 = arith.constant 0 : index
    %c0_18 = arith.constant 0 : index
    %23 = vector.load %arg8[%c0_17, %c0_18] : memref<1x8xf32, #tpu.memory_space<vmem>>, vector<1x8xf32>
    tpu.vector_store %arg8[%c0_17, %c0_18], %22 {strides = array<i32>} : memref<1x8xf32, #tpu.memory_space<vmem>>, vector<1x8xf32>,
    return
  }
  func.func @transform_0(%arg0: i32) -> (i32, i32) {
    %c0_i32 = arith.constant 0 : i32
    %c0_i32_0 = arith.constant 0 : i32
    return %c0_i32, %arg0 : i32, i32
  }
  func.func @transform_1(%arg0: i32) -> (i32, i32) {
    %c0_i32 = arith.constant 0 : i32
    %c0_i32_0 = arith.constant 0 : i32
    %c0_i32_1 = arith.constant 0 : i32
    return %c0_i32, %c0_i32_0 : i32, i32
  }
  func.func @transform_2(%arg0: i32) -> (i32, i32) {
    %c0_i32 = arith.constant 0 : i32
    %c0_i32_0 = arith.constant 0 : i32
    %c0_i32_1 = arith.constant 0 : i32
    return %c0_i32, %c0_i32_0 : i32, i32
  }
  func.func @transform_3(%arg0: i32) -> (i32, i32) {
    %c0_i32 = arith.constant 0 : i32
    %c0_i32_0 = arith.constant 0 : i32
    %c0_i32_1 = arith.constant 0 : i32
    return %c0_i32, %c0_i32_0 : i32, i32
  }
  func.func @transform_4(%arg0: i32) -> (i32, i32) {
    %c0_i32 = arith.constant 0 : i32
    %c0_i32_0 = arith.constant 0 : i32
    %c0_i32_1 = arith.constant 0 : i32
    return %c0_i32, %c0_i32_0 : i32, i32
  }
  func.func @transform_5(%arg0: i32) -> (i32, i32) {
    %c0_i32 = arith.constant 0 : i32
    %c0_i32_0 = arith.constant 0 : i32
    %c0_i32_1 = arith.constant 0 : i32
    return %c0_i32, %c0_i32_0 : i32, i32
  }
  func.func @transform_6(%arg0: i32) -> (i32, i32) {
    %c0_i32 = arith.constant 0 : i32
    %c0_i32_0 = arith.constant 0 : i32
    %c0_i32_1 = arith.constant 0 : i32
    return %c0_i32, %c0_i32_0 : i32, i32
  }
  func.func @transform_7(%arg0: i32) -> (i32, i32) {
    %c0_i32 = arith.constant 0 : i32
    %c0_i32_0 = arith.constant 0 : i32
    return %c0_i32, %arg0 : i32, i32
  }
}

</mosaic_0001>

<llo_original>
// kernel: tpu_custom_call.1
$region0: #{tpu_custom_call.1}
  #allocation0 [shape = 'u32[]', space=smem, size = 0x4, offset = 0x4, fixed_abs, tag = 'smem constant byte address 0x4 - core index']
  #allocation1 [shape = 'u32[144,128]{1,0:T(1,128)}', space=vmem, size = 0x12000, scoped, tag = 'internal scratch']
  #allocation2 [shape = 'f32[1,1]{1,0:T(1,128)S(6)}', space=smem, size = 0x200, scoped, tag = 'scoped memory for tpu_custom_call.1']
  %s0 = inlined_call_operand.vmem [shape: f32[8,8], index: 0, kind: input, shape index: {}]
  %s1 = inlined_call_operand.vmem [shape: f32[32,8], index: 1, kind: input, shape index: {}]
  %s2 = inlined_call_operand.vmem [shape: f32[32,1], index: 2, kind: input, shape index: {}]
  %s3 = inlined_call_operand.vmem [shape: f32[32,32], index: 3, kind: input, shape index: {}]
  %s4 = inlined_call_operand.vmem [shape: f32[32,1], index: 4, kind: input, shape index: {}]
  %s5 = inlined_call_operand.vmem [shape: f32[32,1], index: 5, kind: input, shape index: {}]
  %s6 = inlined_call_operand.<no memory space> [shape: f32[1,1], index: 6, kind: input, shape index: {}]
  %s7 = inlined_call_operand.hbm [shape: f32[1,8], index: 7, kind: output, shape index: {}]
  %s8 = sld [smem:[#allocation0]]
  $region38: #{tpu_custom_call.1} parent=0
    _
  %s10 = ssub.s32 1, %s8
  %s11 = scalar_select 0, %s10, %s8
  %12 = sst [smem:[#allocation2]] %s6
  $region1: #{tpu_custom_call.1} parent=0
    #allocation3 [shape = 'u8[512]{0}', space=vmem, size = 0x400, scoped, tag = 'output window, operand 0, single buffered']
    #allocation4 [shape = 's32[1]{0}', space=sflag, size = 0x4, scoped, tag = 'scoped memory for tpu_custom_call.1']
    %13 = vsyncpa [#allocation4], 0
    // Predicated region
    $region2: #{tpu_custom_call.1} parent=1 // pred_check
      _
    $region3: #{tpu_custom_call.1} parent=1 // pred_check_branch
      %15 = sbr.rel (0) target = $region5
    $region4: #{tpu_custom_call.1} parent=1 // pred_region
      _
    $region5: #{tpu_custom_call.1} parent=1 // pred_fallthru
      _
    // Predicated region
    $region6: #{tpu_custom_call.1} parent=1 // pred_check
      _
    $region7: #{tpu_custom_call.1} parent=1 // pred_check_branch
      %17 = sbr.rel (0) target = $region9
    $region8: #{tpu_custom_call.1} parent=1 // pred_region
      _
    $region9: #{tpu_custom_call.1} parent=1 // pred_fallthru
      _
    // Predicated region
    $region10: #{tpu_custom_call.1} parent=1 // pred_check
      _
    $region11: #{tpu_custom_call.1} parent=1 // pred_check_branch
      %19 = sbr.rel (0) target = $region13
    $region12: #{tpu_custom_call.1} parent=1 // pred_region
      _
    $region13: #{tpu_custom_call.1} parent=1 // pred_fallthru
      _
    // Predicated region
    $region14: #{tpu_custom_call.1} parent=1 // pred_check
      _
    $region15: #{tpu_custom_call.1} parent=1 // pred_check_branch
      %21 = sbr.rel (0) target = $region17
    $region16: #{tpu_custom_call.1} parent=1 // pred_region
      _
    $region17: #{tpu_custom_call.1} parent=1 // pred_fallthru
      _
    // Predicated region
    $region18: #{tpu_custom_call.1} parent=1 // pred_check
      _
    $region19: #{tpu_custom_call.1} parent=1 // pred_check_branch
      %23 = sbr.rel (0) target = $region21
    $region20: #{tpu_custom_call.1} parent=1 // pred_region
      _
    $region21: #{tpu_custom_call.1} parent=1 // pred_fallthru
      _
    // Predicated region
    $region22: #{tpu_custom_call.1} parent=1 // pred_check
      _
    $region23: #{tpu_custom_call.1} parent=1 // pred_check_branch
      %25 = sbr.rel (0) target = $region25
    $region24: #{tpu_custom_call.1} parent=1 // pred_region
      _
    $region25: #{tpu_custom_call.1} parent=1 // pred_fallthru
      _
    // Predicated region
    $region26: #{tpu_custom_call.1} parent=1 // pred_check
      _
    $region27: #{tpu_custom_call.1} parent=1 // pred_check_branch
      %27 = sbr.rel (0) target = $region29
    $region28: #{tpu_custom_call.1} parent=1 // pred_region
      _
    $region29: #{tpu_custom_call.1} parent=1 // pred_fallthru
      _
    %v28 = vld [vmem:[%s1] sm:$0xff]
    %v29 = vld [vmem:[%s1 + $0x8] sm:$0xff]
    %v30 = vld [vmem:[%s1 + $0x10] sm:$0xff]
    %v31 = vld [vmem:[%s1 + $0x18] sm:$0xff]
    %v32 = vld [vmem:[%s0] sm:$0xff]
    %v33 = vld [vmem:[%s2] sm:$0xff]
    %v34 = vld [vmem:[%s2 + $0x8] sm:$0xff]
    %v35 = vld [vmem:[%s2 + $0x10] sm:$0xff]
    %v36 = vld [vmem:[%s2 + $0x18] sm:$0xff]
    %38 = vset.pattern.permute.xlu0 0
    %39 = vperm.xlu0 %38, %v33
    %v40 = vpop.permute.xlu0 %39
    %43 = vset.pattern.permute.xlu0 0
    %44 = vperm.xlu0 %43, %v34
    %v45 = vpop.permute.xlu0 %44
    %48 = vset.pattern.permute.xlu0 0
    %49 = vperm.xlu0 %48, %v35
    %v50 = vpop.permute.xlu0 %49
    %53 = vset.pattern.permute.xlu0 0
    %54 = vperm.xlu0 %53, %v36
    %v55 = vpop.permute.xlu0 %54
    %vm57 = vcmask 64512
    %v59 = vsel %vm57, %v28, 0
    %v62 = vsel %vm57, %v29, 0
    %v65 = vsel %vm57, %v30, 0
    %v68 = vsel %vm57, %v31, 0
    %70 = vmatprep.subr.mxu0 0.0
    %71 = vmatpush1.msra.mxu0 %v32
    %72 = vmatprep.subr.mxu0 0.0
    %73 = vmatpush1.msra.mxu0 0.0
    %74 = vmatprep.subr.mxu0 0.0
    %75 = vmatpush1.msra.mxu0 0.0
    %76 = vmatprep.subr.mxu0 0.0
    %77 = vmatpush1.msra.mxu0 0.0
    %78 = vmatprep.subr.mxu0 0.0
    %79 = vmatpush1.msra.mxu0 0.0
    %80 = vmatprep.subr.mxu0 0.0
    %81 = vmatpush1.msra.mxu0 0.0
    %82 = vmatprep.subr.mxu0 0.0
    %83 = vmatpush1.msra.mxu0 0.0
    %84 = vmatprep.subr.mxu0 0.0
    %85 = vmatpush1.msra.mxu0 0.0
    %86 = vmatprep.subr.mxu0 0.0
    %87 = vmatpush1.msra.mxu0 0.0
    %88 = vmatprep.subr.mxu0 0.0
    %89 = vmatpush1.msra.mxu0 0.0
    %90 = vmatprep.subr.mxu0 0.0
    %91 = vmatpush1.msra.mxu0 0.0
    %92 = vmatprep.subr.mxu0 0.0
    %93 = vmatpush1.msra.mxu0 0.0
    %94 = vmatprep.subr.mxu0 0.0
    %95 = vmatpush1.msra.mxu0 0.0
    %96 = vmatprep.subr.mxu0 0.0
    %97 = vmatpush1.msra.mxu0 0.0
    %98 = vmatprep.subr.mxu0 0.0
    %99 = vmatpush1.msra.mxu0 0.0
    %100 = vmatprep.subr.mxu0 0.0
    %101 = vmatpush1.msra.mxu0 0.0
    %102 = vmatprep.subr.mxu0 0.0
    %103 = vmatpush1.msra.mxu0 0.0
    %104 = vmatprep.subr.mxu0 0.0
    %105 = vmatpush1.msra.mxu0 0.0
    %106 = vmatprep.subr.mxu0 0.0
    %107 = vmatpush1.msra.mxu0 0.0
    %108 = vmatprep.subr.mxu0 0.0
    %109 = vmatpush1.msra.mxu0 0.0
    %110 = vmatprep.subr.mxu0 0.0
    %111 = vmatpush1.msra.mxu0 0.0
    %112 = vmatprep.subr.mxu0 0.0
    %113 = vmatpush1.msra.mxu0 0.0
    %114 = vmatprep.subr.mxu0 0.0
    %115 = vmatpush1.msra.mxu0 0.0
    %116 = vmatprep.subr.mxu0 0.0
    %117 = vmatpush1.msra.mxu0 0.0
    %118 = vmatprep.subr.mxu0 0.0
    %119 = vmatpush1.msra.mxu0 0.0
    %120 = vmatprep.subr.mxu0 0.0
    %121 = vmatpush1.msra.mxu0 0.0
    %122 = vmatprep.subr.mxu0 0.0
    %123 = vmatpush1.msra.mxu0 0.0
    %124 = vmatprep.subr.mxu0 0.0
    %125 = vmatpush1.msra.mxu0 0.0
    %126 = vmatprep.subr.mxu0 0.0
    %127 = vmatpush1.msra.mxu0 0.0
    %128 = vmatprep.subr.mxu0 0.0
    %129 = vmatpush1.msra.mxu0 0.0
    %130 = vmatprep.subr.mxu0 0.0
    %131 = vmatpush1.msra.mxu0 0.0
    %132 = vmatprep.subr.mxu0 0.0
    %133 = vmatpush1.msra.mxu0 0.0
    %134 = vmatprep.mubr.f32.mxu0 0.0
    %135 = vmatmul.mubr.f32.gmra.mrb[0].mxu0 %v59
    %v136 = vpop.f32.mrb[0].mxu0
    %v137 = vadd.f32 %v40, %v136
    %v138 = vpop.f32.mrb[0].mxu0
    %139 = vmatprep.mubr.f32.mxu0 0.0
    %140 = vmatmul.mubr.f32.gmra.mrb[0].mxu0 %v62
    %v141 = vpop.f32.mrb[0].mxu0
    %v142 = vadd.f32 %v45, %v141
    %v143 = vpop.f32.mrb[0].mxu0
    %144 = vmatprep.mubr.f32.mxu0 0.0
    %145 = vmatmul.mubr.f32.gmra.mrb[0].mxu0 %v65
    %v146 = vpop.f32.mrb[0].mxu0
    %v147 = vadd.f32 %v50, %v146
    %v148 = vpop.f32.mrb[0].mxu0
    %149 = vmatprep.mubr.f32.mxu0 0.0
    %150 = vmatmul.mubr.f32.gmra.mrb[0].mxu0 %v68
    %v151 = vpop.f32.mrb[0].mxu0
    %v152 = vadd.f32 %v55, %v151
    %v153 = vpop.f32.mrb[0].mxu0
    %154 = vdwg.mxu0
    %v155 = vmax.f32 %v137, 0.0
    %v156 = vmax.f32 %v142, 0.0
    %v157 = vmax.f32 %v147, 0.0
    %v158 = vmax.f32 %v152, 0.0
    %v159 = vld [vmem:[%s3] sm:$0xff]
    %v160 = vld [vmem:[%s3 + $0x8] sm:$0xff]
    %v161 = vld [vmem:[%s3 + $0x10] sm:$0xff]
    %v162 = vld [vmem:[%s3 + $0x18] sm:$0xff]
    %v163 = vld [vmem:[%s4] sm:$0xff]
    %v164 = vld [vmem:[%s4 + $0x8] sm:$0xff]
    %v165 = vld [vmem:[%s4 + $0x10] sm:$0xff]
    %v166 = vld [vmem:[%s4 + $0x18] sm:$0xff]
    %168 = vset.pattern.permute.xlu0 0
    %169 = vperm.xlu0 %168, %v163
    %v170 = vpop.permute.xlu0 %169
    %173 = vset.pattern.permute.xlu0 0
    %174 = vperm.xlu0 %173, %v164
    %v175 = vpop.permute.xlu0 %174
    %178 = vset.pattern.permute.xlu0 0
    %179 = vperm.xlu0 %178, %v165
    %v180 = vpop.permute.xlu0 %179
    %183 = vset.pattern.permute.xlu0 0
    %184 = vperm.xlu0 %183, %v166
    %v185 = vpop.permute.xlu0 %184
    %vm187 = vcmask 261120
    %v189 = vsel %vm187, %v159, 0
    %v192 = vsel %vm187, %v160, 0
    %v195 = vsel %vm187, %v161, 0
    %v198 = vsel %vm187, %v162, 0
    %200 = vmatprep.subr.mxu0 0.0
    %201 = vmatpush1.msra.mxu0 %v155
    %202 = vmatprep.subr.mxu0 0.0
    %203 = vmatpush1.msra.mxu0 %v156
    %204 = vmatprep.subr.mxu0 0.0
    %205 = vmatpush1.msra.mxu0 %v157
    %206 = vmatprep.subr.mxu0 0.0
    %207 = vmatpush1.msra.mxu0 %v158
    %208 = vmatprep.subr.mxu0 0.0
    %209 = vmatpush1.msra.mxu0 0.0
    %210 = vmatprep.subr.mxu0 0.0
    %211 = vmatpush1.msra.mxu0 0.0
    %212 = vmatprep.subr.mxu0 0.0
    %213 = vmatpush1.msra.mxu0 0.0
    %214 = vmatprep.subr.mxu0 0.0
    %215 = vmatpush1.msra.mxu0 0.0
    %216 = vmatprep.subr.mxu0 0.0
    %217 = vmatpush1.msra.mxu0 0.0
    %218 = vmatprep.subr.mxu0 0.0
    %219 = vmatpush1.msra.mxu0 0.0
    %220 = vmatprep.subr.mxu0 0.0
    %221 = vmatpush1.msra.mxu0 0.0
    %222 = vmatprep.subr.mxu0 0.0
    %223 = vmatpush1.msra.mxu0 0.0
    %224 = vmatprep.subr.mxu0 0.0
    %225 = vmatpush1.msra.mxu0 0.0
    %226 = vmatprep.subr.mxu0 0.0
    %227 = vmatpush1.msra.mxu0 0.0
    %228 = vmatprep.subr.mxu0 0.0
    %229 = vmatpush1.msra.mxu0 0.0
    %230 = vmatprep.subr.mxu0 0.0
    %231 = vmatpush1.msra.mxu0 0.0
    %232 = vmatprep.subr.mxu0 0.0
    %233 = vmatpush1.msra.mxu0 0.0
    %234 = vmatprep.subr.mxu0 0.0
    %235 = vmatpush1.msra.mxu0 0.0
    %236 = vmatprep.subr.mxu0 0.0
    %237 = vmatpush1.msra.mxu0 0.0
    %238 = vmatprep.subr.mxu0 0.0
    %239 = vmatpush1.msra.mxu0 0.0
    %240 = vmatprep.subr.mxu0 0.0
    %241 = vmatpush1.msra.mxu0 0.0
    %242 = vmatprep.subr.mxu0 0.0
    %243 = vmatpush1.msra.mxu0 0.0
    %244 = vmatprep.subr.mxu0 0.0
    %245 = vmatpush1.msra.mxu0 0.0
    %246 = vmatprep.subr.mxu0 0.0
    %247 = vmatpush1.msra.mxu0 0.0
    %248 = vmatprep.subr.mxu0 0.0
    %249 = vmatpush1.msra.mxu0 0.0
    %250 = vmatprep.subr.mxu0 0.0
    %251 = vmatpush1.msra.mxu0 0.0
    %252 = vmatprep.subr.mxu0 0.0
    %253 = vmatpush1.msra.mxu0 0.0
    %254 = vmatprep.subr.mxu0 0.0
    %255 = vmatpush1.msra.mxu0 0.0
    %256 = vmatprep.subr.mxu0 0.0
    %257 = vmatpush1.msra.mxu0 0.0
    %258 = vmatprep.subr.mxu0 0.0
    %259 = vmatpush1.msra.mxu0 0.0
    %260 = vmatprep.subr.mxu0 0.0
    %261 = vmatpush1.msra.mxu0 0.0
    %262 = vmatprep.subr.mxu0 0.0
    %263 = vmatpush1.msra.mxu0 0.0
    %264 = vmatprep.mubr.f32.mxu0 0.0
    %265 = vmatmul.mubr.f32.gmra.mrb[0].mxu0 %v189
    %v266 = vpop.f32.mrb[0].mxu0
    %v267 = vadd.f32 %v170, %v266
    %v268 = vpop.f32.mrb[0].mxu0
    %269 = vmatprep.mubr.f32.mxu0 0.0
    %270 = vmatmul.mubr.f32.gmra.mrb[0].mxu0 %v192
    %v271 = vpop.f32.mrb[0].mxu0
    %v272 = vadd.f32 %v175, %v271
    %v273 = vpop.f32.mrb[0].mxu0
    %274 = vmatprep.mubr.f32.mxu0 0.0
    %275 = vmatmul.mubr.f32.gmra.mrb[0].mxu0 %v195
    %v276 = vpop.f32.mrb[0].mxu0
    %v277 = vadd.f32 %v180, %v276
    %v278 = vpop.f32.mrb[0].mxu0
    %279 = vmatprep.mubr.f32.mxu0 0.0
    %280 = vmatmul.mubr.f32.gmra.mrb[0].mxu0 %v198
    %v281 = vpop.f32.mrb[0].mxu0
    %v282 = vadd.f32 %v185, %v281
    %v283 = vpop.f32.mrb[0].mxu0
    %284 = vdwg.mxu0
    %v285 = vmax.f32 %v267, 0.0
    %v286 = vmax.f32 %v272, 0.0
    %v287 = vmax.f32 %v277, 0.0
    %v288 = vmax.f32 %v282, 0.0
    %v289 = vld [vmem:[%s5] sm:$0xff]
    %v290 = vld [vmem:[%s5 + $0x8] sm:$0xff]
    %v291 = vld [vmem:[%s5 + $0x10] sm:$0xff]
    %v292 = vld [vmem:[%s5 + $0x18] sm:$0xff]
    %294 = vset.pattern.permute.xlu0 0
    %295 = vperm.xlu0 %294, %v289
    %v296 = vpop.permute.xlu0 %295
    %299 = vset.pattern.permute.xlu0 0
    %300 = vperm.xlu0 %299, %v290
    %v301 = vpop.permute.xlu0 %300
    %304 = vset.pattern.permute.xlu0 0
    %305 = vperm.xlu0 %304, %v291
    %v306 = vpop.permute.xlu0 %305
    %309 = vset.pattern.permute.xlu0 0
    %310 = vperm.xlu0 %309, %v292
    %v311 = vpop.permute.xlu0 %310
    %v313 = vmul.f32 %v285, %v296
    %v314 = vmul.f32 %v286, %v301
    %v315 = vmul.f32 %v287, %v306
    %v316 = vmul.f32 %v288, %v311
    %v317 = vsel %vm57, %v313, 0.0
    %v318 = vsel %vm57, %v314, 0.0
    %v319 = vadd.f32 %v317, %v318
    %v320 = vsel %vm57, %v315, 0.0
    %v321 = vadd.f32 %v319, %v320
    %v322 = vsel %vm57, %v316, 0.0
    %v323 = vadd.f32 %v321, %v322
    %v324 = vrot.slane %v323, 4
    %v325 = vadd.f32 %v323, %v324
    %v326 = vrot.slane %v325, 2
    %v327 = vadd.f32 %v325, %v326
    %v328 = vrot.slane %v327, 1
    %v329 = vadd.f32 %v327, %v328
    %s330 = sld [smem:[#allocation2]]
    %v331 = vstv %s330
    %v332 = vadd.f32 %v329, %v331
    %vm333 = vcmask 57344
    %334 = vst.msk [vmem:[#allocation3] sm:$0x1] %vm333, %v332
    // Predicated region
    $region30: #{tpu_custom_call.1} parent=1 // pred_check
      _
    $region31: #{tpu_custom_call.1} parent=1 // pred_check_branch
      %336 = sbr.rel (0) target = $region33
    $region32: #{tpu_custom_call.1} parent=1 // pred_region
      %s338 = ssub.s32 16, 16
      %339 = vsyncadd [#allocation4], %s338
      %s341 = sshll.u32 [#allocation3], 4
      %s342 = int_to_ptr.vmem [resolvable:$true] %s341
      %344 = dma.vmem_to_hbm [thread:$0]  %s342, 16, %s7, [#allocation4]
    $region33: #{tpu_custom_call.1} parent=1 // pred_fallthru
      _
    // Predicated region
    $region34: #{tpu_custom_call.1} parent=1 // pred_check
      _
    $region35: #{tpu_custom_call.1} parent=1 // pred_check_branch
      %346 = sbr.rel (0) target = $region37
    $region36: #{tpu_custom_call.1} parent=1 // pred_region
      %347 = dma.done [#allocation4], 16
    $region37: #{tpu_custom_call.1} parent=1 // pred_fallthru
      _
    %348 = vsyncpa [#allocation4], 1

</llo_original>
